<compile_context>
chip_gen: v6e
topology: v6e:2x2x1
jax: 0.10.0
libtpu: 0.0.40
codegen_flags: <defaults>
</compile_context>

<pallas_src>
import functools

import jax
import jax.numpy as jnp
from jax.experimental import pallas as pl
from jax.experimental.pallas import tpu as pltpu


# ---------------------------------------------------------------------------
# Configuration (small, deterministic)
# ---------------------------------------------------------------------------
NUM_LABELS = 4          # len(labels), dataset != emotion/situation
C, H, W = 3, 16, 16     # label_img spatial dims (NCHW)
PATCH = 8               # patch-embed kernel/stride
NUM_PATCHES = (H // PATCH) * (W // PATCH)       # 4
KP = C * PATCH * PATCH                          # 192 (im2col inner dim)
KP_PAD = 256            # lane-aligned inner dim (review: pad 192 -> 256)
NL_PAD = 8              # sublane-aligned label-row count (4 -> 8)
WIDTH_IMG = 32          # image tower width
WIDTH_TXT = 32          # text tower width
EMBED_DIM = 32          # shared projection dim
BATCH = 2
SEQ = 8
VOCAB = 32
OUT_LANES = 128         # lane-dense output slab width
LOSS_ROW = BATCH        # slab row carrying the CE loss scalar (loss variant)
LOGIT_SCALE = 1.0 / 0.07


# ---------------------------------------------------------------------------
# Shared in-kernel compute: towers + normalize + scaled similarity
# ---------------------------------------------------------------------------
def _towers_and_logits(ids_ref, img_ref, wimg_ref, tokp_ref):
    # ----- image tower: one MXU matmul on pre-folded, pre-padded params ----
    img_feat = jnp.dot(img_ref[...], wimg_ref[...],
                       preferred_element_type=jnp.float32)       # [NL_PAD, D]

    # ----- text tower: bag-of-words from SMEM ids, then one MXU matmul -----
    # (pool @ onehot) @ tok_proj re-association; no gather, no ids DMA.
    row_i = jax.lax.broadcasted_iota(jnp.int32, (BATCH, VOCAB), 0)
    voc_i = jax.lax.broadcasted_iota(jnp.int32, (BATCH, VOCAB), 1)
    inv_s = jnp.float32(1.0 / SEQ)
    zero = jnp.float32(0.0)
    bow = jnp.zeros((BATCH, VOCAB), jnp.float32)
    for b in range(BATCH):
        for s in range(SEQ):
            tok = ids_ref[b * SEQ + s]
            bow = bow + jnp.where((row_i == b) & (voc_i == tok), inv_s, zero)
    txt_feat = jnp.dot(bow, tokp_ref[...],
                       preferred_element_type=jnp.float32)       # [B, D]

    # ----- L2 normalize (as in CLIP); zero-padded rows stay exactly zero ---
    img_feat = img_feat * jax.lax.rsqrt(
        jnp.sum(img_feat * img_feat, axis=-1, keepdims=True) + 1e-12)
    txt_feat = txt_feat * jax.lax.rsqrt(
        jnp.sum(txt_feat * txt_feat, axis=-1, keepdims=True) + 1e-12)

    # ----- logits_per_text = scale * text @ image^T (transposed contraction,
    # no explicit XLU transpose).  Columns >= NUM_LABELS are exactly zero. ---
    logits = LOGIT_SCALE * jax.lax.dot_general(
        txt_feat, img_feat, (((1,), (1,)), ((), ())),
        preferred_element_type=jnp.float32)                      # [B, NL_PAD]
    return logits


# ---------------------------------------------------------------------------
# Kernel variants (specialized on the static with_loss flag)
# ---------------------------------------------------------------------------
def _clip_kernel_infer(ids_ref, img_ref, wimg_ref, tokp_ref, out_ref):
    logits = _towers_and_logits(ids_ref, img_ref, wimg_ref, tokp_ref)
    out_ref[...] = jnp.zeros((NL_PAD, OUT_LANES), jnp.float32)
    out_ref[0:BATCH, 0:NL_PAD] = logits


def _clip_kernel_loss(ids_ref, golds_ref, img_ref, wimg_ref, tokp_ref, out_ref):
    logits = _towers_and_logits(ids_ref, img_ref, wimg_ref, tokp_ref)

    # ----- fused cross-entropy (mean over batch); padded cols masked -------
    row_i = jax.lax.broadcasted_iota(jnp.int32, (BATCH, NL_PAD), 0)
    col_i = jax.lax.broadcasted_iota(jnp.int32, (BATCH, NL_PAD), 1)
    valid = col_i < NUM_LABELS
    masked = jnp.where(valid, logits, jnp.float32(-1e30))
    m = jnp.max(masked, axis=-1, keepdims=True)
    lse = m + jnp.log(jnp.sum(jnp.exp(masked - m), axis=-1, keepdims=True))

    gold_oh = jnp.zeros((BATCH, NL_PAD), jnp.float32)
    one = jnp.float32(1.0)
    zero = jnp.float32(0.0)
    for b in range(BATCH):
        g = golds_ref[b]
        gold_oh = gold_oh + jnp.where((row_i == b) & (col_i == g), one, zero)
    gold_logit = jnp.sum(logits * gold_oh, axis=-1, keepdims=True)
    loss = jnp.mean(lse - gold_logit)

    # ----- single lane-dense output slab: logits rows + loss row -----------
    out_ref[...] = jnp.zeros((NL_PAD, OUT_LANES), jnp.float32)
    out_ref[0:BATCH, 0:NL_PAD] = logits
    out_ref[LOSS_ROW:LOSS_ROW + 1, :] = jnp.full((1, OUT_LANES), loss,
                                                 jnp.float32)


# ---------------------------------------------------------------------------
# pallas_call wrappers
# ---------------------------------------------------------------------------
_IN_SPECS = [
    pl.BlockSpec((NL_PAD, KP_PAD), lambda i, *_: (0, 0)),       # pooled patches
    pl.BlockSpec((KP_PAD, EMBED_DIM), lambda i, *_: (0, 0)),    # folded image W
    pl.BlockSpec((VOCAB, EMBED_DIM), lambda i, *_: (0, 0)),     # folded text W
]
_OUT_SPEC = pl.BlockSpec((NL_PAD, OUT_LANES), lambda i, *_: (0, 0))
_OUT_SHAPE = jax.ShapeDtypeStruct((NL_PAD, OUT_LANES), jnp.float32)


def clip_fused_infer(ids_flat, img_pooled_pad, w_img_pad, tok_proj):
    return pl.pallas_call(
        _clip_kernel_infer,
        out_shape=_OUT_SHAPE,
        grid_spec=pltpu.PrefetchScalarGridSpec(
            num_scalar_prefetch=1, grid=(1,),
            in_specs=list(_IN_SPECS), out_specs=_OUT_SPEC),
    )(ids_flat, img_pooled_pad, w_img_pad, tok_proj)


def clip_fused_loss(ids_flat, golds, img_pooled_pad, w_img_pad, tok_proj):
    return pl.pallas_call(
        _clip_kernel_loss,
        out_shape=_OUT_SHAPE,
        grid_spec=pltpu.PrefetchScalarGridSpec(
            num_scalar_prefetch=2, grid=(1,),
            in_specs=list(_IN_SPECS), out_specs=_OUT_SPEC),
    )(ids_flat, golds, img_pooled_pad, w_img_pad, tok_proj)


# ---------------------------------------------------------------------------
# Glue: init (with one-time folds + padding), forward wrapper
# ---------------------------------------------------------------------------
def im2col_pooled(x_nchw):
    # NCHW -> [N, num_patches, C*p*p] (channel-major per patch) -> mean over
    # patches -> [N, C*p*p].  Pooling commutes with the linear patch embed.
    n = x_nchw.shape[0]
    x = x_nchw.reshape(n, C, H // PATCH, PATCH, W // PATCH, PATCH)
    x = x.transpose(0, 2, 4, 1, 3, 5)                 # [N, Hp, Wp, C, p, p]
    x = x.reshape(n, NUM_PATCHES, KP)
    return jnp.mean(x, axis=1)                        # [N, KP]


def init_params(key):
    ks = jax.random.split(key, 5)
    # label_img is an nn.Parameter stacked from preprocessed images (NCHW)
    label_img = jax.random.normal(ks[0], (NUM_LABELS, C, H, W), jnp.float32)
    w_patch = jax.random.normal(ks[1], (KP, WIDTH_IMG), jnp.float32) * 0.02
    w_img_proj = jax.random.normal(ks[2], (WIDTH_IMG, EMBED_DIM), jnp.float32) * 0.02
    tok_emb = jax.random.normal(ks[3], (VOCAB, WIDTH_TXT), jnp.float32) * 0.02
    w_txt_proj = jax.random.normal(ks[4], (WIDTH_TXT, EMBED_DIM), jnp.float32) * 0.02

    # One-time pre-folds, hoisted out of the per-call forward:
    pooled = im2col_pooled(label_img)                           # [NL, KP]
    w_img_combined = jnp.dot(w_patch, w_img_proj)               # [KP, D]
    tok_proj = jnp.dot(tok_emb, w_txt_proj)                     # [V, D]
    # One-time zero padding: KP 192 -> 256 lanes, label rows 4 -> 8 sublanes.
    img_pooled_pad = jnp.zeros((NL_PAD, KP_PAD), jnp.float32)
    img_pooled_pad = img_pooled_pad.at[:NUM_LABELS, :KP].set(pooled)
    w_img_pad = jnp.zeros((KP_PAD, EMBED_DIM), jnp.float32)
    w_img_pad = w_img_pad.at[:KP, :].set(w_img_combined)

    return dict(label_img=label_img, w_patch=w_patch, w_img_proj=w_img_proj,
                tok_emb=tok_emb, w_txt_proj=w_txt_proj,
                img_pooled_pad=img_pooled_pad, w_img_pad=w_img_pad,
                tok_proj=tok_proj)


@functools.partial(jax.jit, static_argnames=("with_loss",))
def clip_template_forward(params, input_ids, attention_mask, golds=None,
                          *, with_loss=False):
    # attention_mask is discarded — the reference forward does the same
    # (self.model(self.label_img, input_ids) never receives the mask).
    del attention_mask

    ids_flat = input_ids.reshape(-1).astype(jnp.int32)          # [B*S] -> SMEM
    if with_loss:
        slab = clip_fused_loss(ids_flat, golds.astype(jnp.int32),
                               params["img_pooled_pad"], params["w_img_pad"],
                               params["tok_proj"])
        loss = slab[LOSS_ROW, 0]
    else:
        slab = clip_fused_infer(ids_flat, params["img_pooled_pad"],
                                params["w_img_pad"], params["tok_proj"])
        loss = None

    logits = slab[:BATCH, :NUM_LABELS]
    # NOTE: torch.mean(logits.reshape(-1, num_labels, 1), dim=-1) is an exact
    # identity (trailing axis of size 1) and is intentionally omitted.
    return {"logits": logits, "loss": loss}


if __name__ == "__main__":
    key = jax.random.PRNGKey(0)
    pkey, dkey, gkey = jax.random.split(key, 3)
    params = init_params(pkey)

    input_ids = jax.random.randint(dkey, (BATCH, SEQ), 0, VOCAB, jnp.int32)
    attention_mask = jnp.ones((BATCH, SEQ), jnp.int32)
    golds = jax.random.randint(gkey, (BATCH,), 0, NUM_LABELS, jnp.int32)

    # Training-style call (with loss)
    out = clip_template_forward(params, input_ids, attention_mask, golds,
                                with_loss=True)
    jax.block_until_ready(out["logits"])
    jax.block_until_ready(out["loss"])
    assert out["logits"].shape == (BATCH, NUM_LABELS)
    assert out["loss"].shape == ()
    assert bool(jnp.all(jnp.isfinite(out["logits"])))
    assert bool(jnp.isfinite(out["loss"]))

    # Inference-style call (no golds, no loss path in the kernel)
    out_inf = clip_template_forward(params, input_ids, attention_mask,
                                    with_loss=False)
    jax.block_until_ready(out_inf["logits"])
    assert out_inf["logits"].shape == (BATCH, NUM_LABELS)
    assert out_inf["loss"] is None
    assert bool(jnp.all(jnp.isfinite(out_inf["logits"])))
    assert bool(jnp.allclose(out_inf["logits"], out["logits"], atol=1e-5))

    print("KERNEL_OK")
</pallas_src>

<mosaic_0001>
module attributes {stable_mosaic.version = 11 : i64} {
  func.func @_clip_kernel_loss(%arg0: i32, %arg1: memref<16xi32, #tpu.memory_space<smem>>, %arg2: memref<2xi32, #tpu.memory_space<smem>>, %arg3: memref<8x256xf32, #tpu.memory_space<vmem>>, %arg4: memref<256x32xf32, #tpu.memory_space<vmem>>, %arg5: memref<32x32xf32, #tpu.memory_space<vmem>>, %arg6: memref<8x128xf32, #tpu.memory_space<vmem>>) attributes {dimension_semantics = [#tpu.dimension_semantics<arbitrary>], iteration_bounds = array<i64: 1>, scalar_prefetch = 2 : i64, scratch_operands = 0 : i64, tpu.core_type = #tpu.core_type<tc>, window_params = [{pipeline_mode = #tpu.pipeline_mode<synchronous>, transform_indices = @transform_0, window_bounds = array<i64: 8, 256>}, {pipeline_mode = #tpu.pipeline_mode<synchronous>, transform_indices = @transform_1, window_bounds = array<i64: 256, 32>}, {pipeline_mode = #tpu.pipeline_mode<synchronous>, transform_indices = @transform_2, window_bounds = array<i64: 32, 32>}, {pipeline_mode = #tpu.pipeline_mode<synchronous>, transform_indices = @transform_3, window_bounds = array<i64: 8, 128>}]} {
    %c0 = arith.constant 0 : index
    %c0_0 = arith.constant 0 : index
    %0 = vector.load %arg3[%c0, %c0_0] : memref<8x256xf32, #tpu.memory_space<vmem>>, vector<8x256xf32>
    %c0_1 = arith.constant 0 : index
    %c0_2 = arith.constant 0 : index
    %1 = vector.load %arg4[%c0_1, %c0_2] : memref<256x32xf32, #tpu.memory_space<vmem>>, vector<256x32xf32>
    %cst = arith.constant dense<0.000000e+00> : vector<8x32xf32>
    %2 = tpu.matmul %0, %1, %cst {dimension_numbers = #tpu.dot_dimension_numbers<[1], [0], [0], [1], [0, 0, 1, 1], [], []>} : vector<8x256xf32>, vector<256x32xf32>, vector<8x32xf32> -> vector<8x32xf32>
    %3 = tpu.iota {dimensions = array<i32: 0>} : vector<2x32xi32>
    %4 = tpu.iota {dimensions = array<i32: 1>} : vector<2x32xi32>
    %cst_3 = arith.constant 0.000000e+00 : f32
    %5 = vector.broadcast %cst_3 : f32 to vector<2x32xf32>
    %c0_4 = arith.constant 0 : index
    %6 = memref.load %arg1[%c0_4] : memref<16xi32, #tpu.memory_space<smem>>
    %c0_i32 = arith.constant 0 : i32
    %7 = vector.broadcast %c0_i32 : i32 to vector<2x32xi32>
    %8 = arith.cmpi eq, %3, %7 : vector<2x32xi32>
    %9 = vector.broadcast %6 : i32 to vector<2x32xi32>
    %10 = arith.cmpi eq, %4, %9 : vector<2x32xi32>
    %11 = arith.andi %8, %10 : vector<2x32xi1>
    %cst_5 = arith.constant 1.250000e-01 : f32
    %cst_6 = arith.constant 0.000000e+00 : f32
    %12 = vector.broadcast %cst_5 : f32 to vector<2x32xf32>
    %13 = vector.broadcast %cst_6 : f32 to vector<2x32xf32>
    %14 = arith.select %11, %12, %13 : vector<2x32xi1>, vector<2x32xf32>
    %15 = arith.addf %5, %14 : vector<2x32xf32>
    %c1 = arith.constant 1 : index
    %16 = memref.load %arg1[%c1] : memref<16xi32, #tpu.memory_space<smem>>
    %c0_i32_7 = arith.constant 0 : i32
    %17 = vector.broadcast %c0_i32_7 : i32 to vector<2x32xi32>
    %18 = arith.cmpi eq, %3, %17 : vector<2x32xi32>
    %19 = vector.broadcast %16 : i32 to vector<2x32xi32>
    %20 = arith.cmpi eq, %4, %19 : vector<2x32xi32>
    %21 = arith.andi %18, %20 : vector<2x32xi1>
    %cst_8 = arith.constant 1.250000e-01 : f32
    %cst_9 = arith.constant 0.000000e+00 : f32
    %22 = vector.broadcast %cst_8 : f32 to vector<2x32xf32>
    %23 = vector.broadcast %cst_9 : f32 to vector<2x32xf32>
    %24 = arith.select %21, %22, %23 : vector<2x32xi1>, vector<2x32xf32>
    %25 = arith.addf %15, %24 : vector<2x32xf32>
    %c2 = arith.constant 2 : index
    %26 = memref.load %arg1[%c2] : memref<16xi32, #tpu.memory_space<smem>>
    %c0_i32_10 = arith.constant 0 : i32
    %27 = vector.broadcast %c0_i32_10 : i32 to vector<2x32xi32>
    %28 = arith.cmpi eq, %3, %27 : vector<2x32xi32>
    %29 = vector.broadcast %26 : i32 to vector<2x32xi32>
    %30 = arith.cmpi eq, %4, %29 : vector<2x32xi32>
    %31 = arith.andi %28, %30 : vector<2x32xi1>
    %cst_11 = arith.constant 1.250000e-01 : f32
    %cst_12 = arith.constant 0.000000e+00 : f32
    %32 = vector.broadcast %cst_11 : f32 to vector<2x32xf32>
    %33 = vector.broadcast %cst_12 : f32 to vector<2x32xf32>
    %34 = arith.select %31, %32, %33 : vector<2x32xi1>, vector<2x32xf32>
    %35 = arith.addf %25, %34 : vector<2x32xf32>
    %c3 = arith.constant 3 : index
    %36 = memref.load %arg1[%c3] : memref<16xi32, #tpu.memory_space<smem>>
    %c0_i32_13 = arith.constant 0 : i32
    %37 = vector.broadcast %c0_i32_13 : i32 to vector<2x32xi32>
    %38 = arith.cmpi eq, %3, %37 : vector<2x32xi32>
    %39 = vector.broadcast %36 : i32 to vector<2x32xi32>
    %40 = arith.cmpi eq, %4, %39 : vector<2x32xi32>
    %41 = arith.andi %38, %40 : vector<2x32xi1>
    %cst_14 = arith.constant 1.250000e-01 : f32
    %cst_15 = arith.constant 0.000000e+00 : f32
    %42 = vector.broadcast %cst_14 : f32 to vector<2x32xf32>
    %43 = vector.broadcast %cst_15 : f32 to vector<2x32xf32>
    %44 = arith.select %41, %42, %43 : vector<2x32xi1>, vector<2x32xf32>
    %45 = arith.addf %35, %44 : vector<2x32xf32>
    %c4 = arith.constant 4 : index
    %46 = memref.load %arg1[%c4] : memref<16xi32, #tpu.memory_space<smem>>
    %c0_i32_16 = arith.constant 0 : i32
    %47 = vector.broadcast %c0_i32_16 : i32 to vector<2x32xi32>
    %48 = arith.cmpi eq, %3, %47 : vector<2x32xi32>
    %49 = vector.broadcast %46 : i32 to vector<2x32xi32>
    %50 = arith.cmpi eq, %4, %49 : vector<2x32xi32>
    %51 = arith.andi %48, %50 : vector<2x32xi1>
    %cst_17 = arith.constant 1.250000e-01 : f32
    %cst_18 = arith.constant 0.000000e+00 : f32
    %52 = vector.broadcast %cst_17 : f32 to vector<2x32xf32>
    %53 = vector.broadcast %cst_18 : f32 to vector<2x32xf32>
    %54 = arith.select %51, %52, %53 : vector<2x32xi1>, vector<2x32xf32>
    %55 = arith.addf %45, %54 : vector<2x32xf32>
    %c5 = arith.constant 5 : index
    %56 = memref.load %arg1[%c5] : memref<16xi32, #tpu.memory_space<smem>>
    %c0_i32_19 = arith.constant 0 : i32
    %57 = vector.broadcast %c0_i32_19 : i32 to vector<2x32xi32>
    %58 = arith.cmpi eq, %3, %57 : vector<2x32xi32>
    %59 = vector.broadcast %56 : i32 to vector<2x32xi32>
    %60 = arith.cmpi eq, %4, %59 : vector<2x32xi32>
    %61 = arith.andi %58, %60 : vector<2x32xi1>
    %cst_20 = arith.constant 1.250000e-01 : f32
    %cst_21 = arith.constant 0.000000e+00 : f32
    %62 = vector.broadcast %cst_20 : f32 to vector<2x32xf32>
    %63 = vector.broadcast %cst_21 : f32 to vector<2x32xf32>
    %64 = arith.select %61, %62, %63 : vector<2x32xi1>, vector<2x32xf32>
    %65 = arith.addf %55, %64 : vector<2x32xf32>
    %c6 = arith.constant 6 : index
    %66 = memref.load %arg1[%c6] : memref<16xi32, #tpu.memory_space<smem>>
    %c0_i32_22 = arith.constant 0 : i32
    %67 = vector.broadcast %c0_i32_22 : i32 to vector<2x32xi32>
    %68 = arith.cmpi eq, %3, %67 : vector<2x32xi32>
    %69 = vector.broadcast %66 : i32 to vector<2x32xi32>
    %70 = arith.cmpi eq, %4, %69 : vector<2x32xi32>
    %71 = arith.andi %68, %70 : vector<2x32xi1>
    %cst_23 = arith.constant 1.250000e-01 : f32
    %cst_24 = arith.constant 0.000000e+00 : f32
    %72 = vector.broadcast %cst_23 : f32 to vector<2x32xf32>
    %73 = vector.broadcast %cst_24 : f32 to vector<2x32xf32>
    %74 = arith.select %71, %72, %73 : vector<2x32xi1>, vector<2x32xf32>
    %75 = arith.addf %65, %74 : vector<2x32xf32>
    %c7 = arith.constant 7 : index
    %76 = memref.load %arg1[%c7] : memref<16xi32, #tpu.memory_space<smem>>
    %c0_i32_25 = arith.constant 0 : i32
    %77 = vector.broadcast %c0_i32_25 : i32 to vector<2x32xi32>
    %78 = arith.cmpi eq, %3, %77 : vector<2x32xi32>
    %79 = vector.broadcast %76 : i32 to vector<2x32xi32>
    %80 = arith.cmpi eq, %4, %79 : vector<2x32xi32>
    %81 = arith.andi %78, %80 : vector<2x32xi1>
    %cst_26 = arith.constant 1.250000e-01 : f32
    %cst_27 = arith.constant 0.000000e+00 : f32
    %82 = vector.broadcast %cst_26 : f32 to vector<2x32xf32>
    %83 = vector.broadcast %cst_27 : f32 to vector<2x32xf32>
    %84 = arith.select %81, %82, %83 : vector<2x32xi1>, vector<2x32xf32>
    %85 = arith.addf %75, %84 : vector<2x32xf32>
    %c8 = arith.constant 8 : index
    %86 = memref.load %arg1[%c8] : memref<16xi32, #tpu.memory_space<smem>>
    %c1_i32 = arith.constant 1 : i32
    %87 = vector.broadcast %c1_i32 : i32 to vector<2x32xi32>
    %88 = arith.cmpi eq, %3, %87 : vector<2x32xi32>
    %89 = vector.broadcast %86 : i32 to vector<2x32xi32>
    %90 = arith.cmpi eq, %4, %89 : vector<2x32xi32>
    %91 = arith.andi %88, %90 : vector<2x32xi1>
    %cst_28 = arith.constant 1.250000e-01 : f32
    %cst_29 = arith.constant 0.000000e+00 : f32
    %92 = vector.broadcast %cst_28 : f32 to vector<2x32xf32>
    %93 = vector.broadcast %cst_29 : f32 to vector<2x32xf32>
    %94 = arith.select %91, %92, %93 : vector<2x32xi1>, vector<2x32xf32>
    %95 = arith.addf %85, %94 : vector<2x32xf32>
    %c9 = arith.constant 9 : index
    %96 = memref.load %arg1[%c9] : memref<16xi32, #tpu.memory_space<smem>>
    %c1_i32_30 = arith.constant 1 : i32
    %97 = vector.broadcast %c1_i32_30 : i32 to vector<2x32xi32>
    %98 = arith.cmpi eq, %3, %97 : vector<2x32xi32>
    %99 = vector.broadcast %96 : i32 to vector<2x32xi32>
    %100 = arith.cmpi eq, %4, %99 : vector<2x32xi32>
    %101 = arith.andi %98, %100 : vector<2x32xi1>
    %cst_31 = arith.constant 1.250000e-01 : f32
    %cst_32 = arith.constant 0.000000e+00 : f32
    %102 = vector.broadcast %cst_31 : f32 to vector<2x32xf32>
    %103 = vector.broadcast %cst_32 : f32 to vector<2x32xf32>
    %104 = arith.select %101, %102, %103 : vector<2x32xi1>, vector<2x32xf32>
    %105 = arith.addf %95, %104 : vector<2x32xf32>
    %c10 = arith.constant 10 : index
    %106 = memref.load %arg1[%c10] : memref<16xi32, #tpu.memory_space<smem>>
    %c1_i32_33 = arith.constant 1 : i32
    %107 = vector.broadcast %c1_i32_33 : i32 to vector<2x32xi32>
    %108 = arith.cmpi eq, %3, %107 : vector<2x32xi32>
    %109 = vector.broadcast %106 : i32 to vector<2x32xi32>
    %110 = arith.cmpi eq, %4, %109 : vector<2x32xi32>
    %111 = arith.andi %108, %110 : vector<2x32xi1>
    %cst_34 = arith.constant 1.250000e-01 : f32
    %cst_35 = arith.constant 0.000000e+00 : f32
    %112 = vector.broadcast %cst_34 : f32 to vector<2x32xf32>
    %113 = vector.broadcast %cst_35 : f32 to vector<2x32xf32>
    %114 = arith.select %111, %112, %113 : vector<2x32xi1>, vector<2x32xf32>
    %115 = arith.addf %105, %114 : vector<2x32xf32>
    %c11 = arith.constant 11 : index
    %116 = memref.load %arg1[%c11] : memref<16xi32, #tpu.memory_space<smem>>
    %c1_i32_36 = arith.constant 1 : i32
    %117 = vector.broadcast %c1_i32_36 : i32 to vector<2x32xi32>
    %118 = arith.cmpi eq, %3, %117 : vector<2x32xi32>
    %119 = vector.broadcast %116 : i32 to vector<2x32xi32>
    %120 = arith.cmpi eq, %4, %119 : vector<2x32xi32>
    %121 = arith.andi %118, %120 : vector<2x32xi1>
    %cst_37 = arith.constant 1.250000e-01 : f32
    %cst_38 = arith.constant 0.000000e+00 : f32
    %122 = vector.broadcast %cst_37 : f32 to vector<2x32xf32>
    %123 = vector.broadcast %cst_38 : f32 to vector<2x32xf32>
    %124 = arith.select %121, %122, %123 : vector<2x32xi1>, vector<2x32xf32>
    %125 = arith.addf %115, %124 : vector<2x32xf32>
    %c12 = arith.constant 12 : index
    %126 = memref.load %arg1[%c12] : memref<16xi32, #tpu.memory_space<smem>>
    %c1_i32_39 = arith.constant 1 : i32
    %127 = vector.broadcast %c1_i32_39 : i32 to vector<2x32xi32>
    %128 = arith.cmpi eq, %3, %127 : vector<2x32xi32>
    %129 = vector.broadcast %126 : i32 to vector<2x32xi32>
    %130 = arith.cmpi eq, %4, %129 : vector<2x32xi32>
    %131 = arith.andi %128, %130 : vector<2x32xi1>
    %cst_40 = arith.constant 1.250000e-01 : f32
    %cst_41 = arith.constant 0.000000e+00 : f32
    %132 = vector.broadcast %cst_40 : f32 to vector<2x32xf32>
    %133 = vector.broadcast %cst_41 : f32 to vector<2x32xf32>
    %134 = arith.select %131, %132, %133 : vector<2x32xi1>, vector<2x32xf32>
    %135 = arith.addf %125, %134 : vector<2x32xf32>
    %c13 = arith.constant 13 : index
    %136 = memref.load %arg1[%c13] : memref<16xi32, #tpu.memory_space<smem>>
    %c1_i32_42 = arith.constant 1 : i32
    %137 = vector.broadcast %c1_i32_42 : i32 to vector<2x32xi32>
    %138 = arith.cmpi eq, %3, %137 : vector<2x32xi32>
    %139 = vector.broadcast %136 : i32 to vector<2x32xi32>
    %140 = arith.cmpi eq, %4, %139 : vector<2x32xi32>
    %141 = arith.andi %138, %140 : vector<2x32xi1>
    %cst_43 = arith.constant 1.250000e-01 : f32
    %cst_44 = arith.constant 0.000000e+00 : f32
    %142 = vector.broadcast %cst_43 : f32 to vector<2x32xf32>
    %143 = vector.broadcast %cst_44 : f32 to vector<2x32xf32>
    %144 = arith.select %141, %142, %143 : vector<2x32xi1>, vector<2x32xf32>
    %145 = arith.addf %135, %144 : vector<2x32xf32>
    %c14 = arith.constant 14 : index
    %146 = memref.load %arg1[%c14] : memref<16xi32, #tpu.memory_space<smem>>
    %c1_i32_45 = arith.constant 1 : i32
    %147 = vector.broadcast %c1_i32_45 : i32 to vector<2x32xi32>
    %148 = arith.cmpi eq, %3, %147 : vector<2x32xi32>
    %149 = vector.broadcast %146 : i32 to vector<2x32xi32>
    %150 = arith.cmpi eq, %4, %149 : vector<2x32xi32>
    %151 = arith.andi %148, %150 : vector<2x32xi1>
    %cst_46 = arith.constant 1.250000e-01 : f32
    %cst_47 = arith.constant 0.000000e+00 : f32
    %152 = vector.broadcast %cst_46 : f32 to vector<2x32xf32>
    %153 = vector.broadcast %cst_47 : f32 to vector<2x32xf32>
    %154 = arith.select %151, %152, %153 : vector<2x32xi1>, vector<2x32xf32>
    %155 = arith.addf %145, %154 : vector<2x32xf32>
    %c15 = arith.constant 15 : index
    %156 = memref.load %arg1[%c15] : memref<16xi32, #tpu.memory_space<smem>>
    %c1_i32_48 = arith.constant 1 : i32
    %157 = vector.broadcast %c1_i32_48 : i32 to vector<2x32xi32>
    %158 = arith.cmpi eq, %3, %157 : vector<2x32xi32>
    %159 = vector.broadcast %156 : i32 to vector<2x32xi32>
    %160 = arith.cmpi eq, %4, %159 : vector<2x32xi32>
    %161 = arith.andi %158, %160 : vector<2x32xi1>
    %cst_49 = arith.constant 1.250000e-01 : f32
    %cst_50 = arith.constant 0.000000e+00 : f32
    %162 = vector.broadcast %cst_49 : f32 to vector<2x32xf32>
    %163 = vector.broadcast %cst_50 : f32 to vector<2x32xf32>
    %164 = arith.select %161, %162, %163 : vector<2x32xi1>, vector<2x32xf32>
    %165 = arith.addf %155, %164 : vector<2x32xf32>
    %c0_51 = arith.constant 0 : index
    %c0_52 = arith.constant 0 : index
    %166 = vector.load %arg5[%c0_51, %c0_52] : memref<32x32xf32, #tpu.memory_space<vmem>>, vector<32x32xf32>
    %cst_53 = arith.constant dense<0.000000e+00> : vector<2x32xf32>
    %167 = tpu.matmul %165, %166, %cst_53 {dimension_numbers = #tpu.dot_dimension_numbers<[1], [0], [0], [1], [0, 0, 1, 1], [], []>} : vector<2x32xf32>, vector<32x32xf32>, vector<2x32xf32> -> vector<2x32xf32>
    %168 = arith.mulf %2, %2 : vector<8x32xf32>
    %cst_54 = arith.constant dense<0.000000e+00> : vector<8xf32>
    %169 = vector.multi_reduction <add>, %168, %cst_54 [1] : vector<8x32xf32> to vector<8xf32>
    %170 = vector.shape_cast %169 : vector<8xf32> to vector<8x1xf32>
    %cst_55 = arith.constant 9.99999996E-13 : f32
    %171 = vector.broadcast %cst_55 : f32 to vector<8x1xf32>
    %172 = arith.addf %170, %171 : vector<8x1xf32>
    %173 = math.rsqrt %172 : vector<8x1xf32>
    %174 = vector.broadcast %173 : vector<8x1xf32> to vector<8x32xf32>
    %175 = arith.mulf %2, %174 : vector<8x32xf32>
    %176 = arith.mulf %167, %167 : vector<2x32xf32>
    %cst_56 = arith.constant dense<0.000000e+00> : vector<2xf32>
    %177 = vector.multi_reduction <add>, %176, %cst_56 [1] : vector<2x32xf32> to vector<2xf32>
    %178 = vector.shape_cast %177 : vector<2xf32> to vector<2x1xf32>
    %cst_57 = arith.constant 9.99999996E-13 : f32
    %179 = vector.broadcast %cst_57 : f32 to vector<2x1xf32>
    %180 = arith.addf %178, %179 : vector<2x1xf32>
    %181 = math.rsqrt %180 : vector<2x1xf32>
    %182 = vector.broadcast %181 : vector<2x1xf32> to vector<2x32xf32>
    %183 = arith.mulf %167, %182 : vector<2x32xf32>
    %cst_58 = arith.constant dense<0.000000e+00> : vector<2x8xf32>
    %184 = tpu.matmul %183, %175, %cst_58 {dimension_numbers = #tpu.dot_dimension_numbers<[1], [1], [0], [0], [0, 0, 1, 0], [], []>} : vector<2x32xf32>, vector<8x32xf32>, vector<2x8xf32> -> vector<2x8xf32>
    %cst_59 = arith.constant 14.2857141 : f32
    %185 = vector.broadcast %cst_59 : f32 to vector<2x8xf32>
    %186 = arith.mulf %185, %184 : vector<2x8xf32>
    %187 = tpu.iota {dimensions = array<i32: 0>} : vector<2x8xi32>
    %188 = tpu.iota {dimensions = array<i32: 1>} : vector<2x8xi32>
    %c4_i32 = arith.constant 4 : i32
    %189 = vector.broadcast %c4_i32 : i32 to vector<2x8xi32>
    %190 = arith.cmpi slt, %188, %189 : vector<2x8xi32>
    %cst_60 = arith.constant -1.000000e+30 : f32
    %191 = vector.broadcast %cst_60 : f32 to vector<2x8xf32>
    %192 = arith.select %190, %186, %191 : vector<2x8xi1>, vector<2x8xf32>
    %cst_61 = arith.constant dense<0xFF800000> : vector<2xf32>
    %193 = vector.multi_reduction <maximumf>, %192, %cst_61 [1] : vector<2x8xf32> to vector<2xf32>
    %194 = vector.shape_cast %193 : vector<2xf32> to vector<2x1xf32>
    %195 = vector.broadcast %194 : vector<2x1xf32> to vector<2x8xf32>
    %196 = arith.subf %192, %195 : vector<2x8xf32>
    %197 = math.exp %196 : vector<2x8xf32>
    %cst_62 = arith.constant dense<0.000000e+00> : vector<2xf32>
    %198 = vector.multi_reduction <add>, %197, %cst_62 [1] : vector<2x8xf32> to vector<2xf32>
    %199 = vector.shape_cast %198 : vector<2xf32> to vector<2x1xf32>
    %200 = math.log %199 : vector<2x1xf32>
    %201 = arith.addf %194, %200 : vector<2x1xf32>
    %cst_63 = arith.constant 0.000000e+00 : f32
    %202 = vector.broadcast %cst_63 : f32 to vector<2x8xf32>
    %c0_64 = arith.constant 0 : index
    %203 = memref.load %arg2[%c0_64] : memref<2xi32, #tpu.memory_space<smem>>
    %c0_i32_65 = arith.constant 0 : i32
    %204 = vector.broadcast %c0_i32_65 : i32 to vector<2x8xi32>
    %205 = arith.cmpi eq, %187, %204 : vector<2x8xi32>
    %206 = vector.broadcast %203 : i32 to vector<2x8xi32>
    %207 = arith.cmpi eq, %188, %206 : vector<2x8xi32>
    %208 = arith.andi %205, %207 : vector<2x8xi1>
    %cst_66 = arith.constant 1.000000e+00 : f32
    %cst_67 = arith.constant 0.000000e+00 : f32
    %209 = vector.broadcast %cst_66 : f32 to vector<2x8xf32>
    %210 = vector.broadcast %cst_67 : f32 to vector<2x8xf32>
    %211 = arith.select %208, %209, %210 : vector<2x8xi1>, vector<2x8xf32>
    %212 = arith.addf %202, %211 : vector<2x8xf32>
    %c1_68 = arith.constant 1 : index
    %213 = memref.load %arg2[%c1_68] : memref<2xi32, #tpu.memory_space<smem>>
    %c1_i32_69 = arith.constant 1 : i32
    %214 = vector.broadcast %c1_i32_69 : i32 to vector<2x8xi32>
    %215 = arith.cmpi eq, %187, %214 : vector<2x8xi32>
    %216 = vector.broadcast %213 : i32 to vector<2x8xi32>
    %217 = arith.cmpi eq, %188, %216 : vector<2x8xi32>
    %218 = arith.andi %215, %217 : vector<2x8xi1>
    %cst_70 = arith.constant 1.000000e+00 : f32
    %cst_71 = arith.constant 0.000000e+00 : f32
    %219 = vector.broadcast %cst_70 : f32 to vector<2x8xf32>
    %220 = vector.broadcast %cst_71 : f32 to vector<2x8xf32>
    %221 = arith.select %218, %219, %220 : vector<2x8xi1>, vector<2x8xf32>
    %222 = arith.addf %212, %221 : vector<2x8xf32>
    %223 = arith.mulf %186, %222 : vector<2x8xf32>
    %cst_72 = arith.constant dense<0.000000e+00> : vector<2xf32>
    %224 = vector.multi_reduction <add>, %223, %cst_72 [1] : vector<2x8xf32> to vector<2xf32>
    %225 = vector.shape_cast %224 : vector<2xf32> to vector<2x1xf32>
    %226 = arith.subf %201, %225 : vector<2x1xf32>
    %227 = vector.shape_cast %226 : vector<2x1xf32> to vector<1x2x1xf32>
    %cst_73 = arith.constant dense<0.000000e+00> : vector<1xf32>
    %228 = vector.multi_reduction <add>, %227, %cst_73 [1, 2] : vector<1x2x1xf32> to vector<1xf32>
    %229 = vector.shape_cast %228 : vector<1xf32> to vector<1x1x1xf32>
    %230 = vector.extract %229[0, 0, 0] : f32 from vector<1x1x1xf32>
    %cst_74 = arith.constant 2.000000e+00 : f32
    %231 = arith.divf %230, %cst_74 : f32
    %cst_75 = arith.constant 0.000000e+00 : f32
    %232 = vector.broadcast %cst_75 : f32 to vector<8x128xf32>
    %c0_76 = arith.constant 0 : index
    %c0_77 = arith.constant 0 : index
    %233 = vector.load %arg6[%c0_76, %c0_77] : memref<8x128xf32, #tpu.memory_space<vmem>>, vector<8x128xf32>
    tpu.vector_store %arg6[%c0_76, %c0_77], %232 {strides = array<i32>} : memref<8x128xf32, #tpu.memory_space<vmem>>, vector<8x128xf32>,
    %c0_78 = arith.constant 0 : index
    %c0_79 = arith.constant 0 : index
    %234 = vector.load %arg6[%c0_78, %c0_79] : memref<8x128xf32, #tpu.memory_space<vmem>>, vector<2x8xf32>
    tpu.vector_store %arg6[%c0_78, %c0_79], %186 {strides = array<i32>} : memref<8x128xf32, #tpu.memory_space<vmem>>, vector<2x8xf32>,
    %235 = vector.broadcast %231 : f32 to vector<1x128xf32>
    %c2_80 = arith.constant 2 : index
    %c0_81 = arith.constant 0 : index
    %236 = vector.load %arg6[%c2_80, %c0_81] : memref<8x128xf32, #tpu.memory_space<vmem>>, vector<1x128xf32>
    tpu.vector_store %arg6[%c2_80, %c0_81], %235 {strides = array<i32>} : memref<8x128xf32, #tpu.memory_space<vmem>>, vector<1x128xf32>,
    return
  }
  func.func @transform_0(%arg0: i32, %arg1: memref<16xi32, #tpu.memory_space<smem>>, %arg2: memref<2xi32, #tpu.memory_space<smem>>) -> (i32, i32) {
    %c0_i32 = arith.constant 0 : i32
    %c0_i32_0 = arith.constant 0 : i32
    %c0_i32_1 = arith.constant 0 : i32
    return %c0_i32, %c0_i32_0 : i32, i32
  }
  func.func @transform_1(%arg0: i32, %arg1: memref<16xi32, #tpu.memory_space<smem>>, %arg2: memref<2xi32, #tpu.memory_space<smem>>) -> (i32, i32) {
    %c0_i32 = arith.constant 0 : i32
    %c0_i32_0 = arith.constant 0 : i32
    %c0_i32_1 = arith.constant 0 : i32
    return %c0_i32, %c0_i32_0 : i32, i32
  }
  func.func @transform_2(%arg0: i32, %arg1: memref<16xi32, #tpu.memory_space<smem>>, %arg2: memref<2xi32, #tpu.memory_space<smem>>) -> (i32, i32) {
    %c0_i32 = arith.constant 0 : i32
    %c0_i32_0 = arith.constant 0 : i32
    %c0_i32_1 = arith.constant 0 : i32
    return %c0_i32, %c0_i32_0 : i32, i32
  }
  func.func @transform_3(%arg0: i32, %arg1: memref<16xi32, #tpu.memory_space<smem>>, %arg2: memref<2xi32, #tpu.memory_space<smem>>) -> (i32, i32) {
    %c0_i32 = arith.constant 0 : i32
    %c0_i32_0 = arith.constant 0 : i32
    %c0_i32_1 = arith.constant 0 : i32
    return %c0_i32, %c0_i32_0 : i32, i32
  }
}

</mosaic_0001>

<llo_original>
// kernel: clip_template_forward.1
$region0: #{clip_template_forward.1}
  #allocation0 [shape = 'u32[]', space=smem, size = 0x4, offset = 0x4, fixed_abs, tag = 'smem constant byte address 0x4 - core index']
  #allocation1 [shape = 'u32[144,128]{1,0:T(1,128)}', space=vmem, size = 0x12000, scoped, tag = 'internal scratch']
  #allocation2 [shape = 's32[1]{0}', space=sflag, size = 0x4, scoped, tag = 'scoped memory for clip_template_forward.1']
  #allocation3 [shape = 'u8[512]{0}', space=smem, size = 0x200, scoped, tag = 'prefetched SMEM operand 0']
  #allocation4 [shape = 'u8[512]{0}', space=smem, size = 0x200, scoped, tag = 'prefetched SMEM operand 1']
  %s0 = inlined_call_operand.vmem [shape: s32[16], index: 0, kind: input, shape index: {}]
  %s1 = inlined_call_operand.vmem [shape: s32[2], index: 1, kind: input, shape index: {}]
  %s2 = inlined_call_operand.vmem [shape: f32[8,256], index: 2, kind: input, shape index: {}]
  %s3 = inlined_call_operand.vmem [shape: f32[256,32], index: 3, kind: input, shape index: {}]
  %s4 = inlined_call_operand.vmem [shape: f32[32,32], index: 4, kind: input, shape index: {}]
  %s5 = inlined_call_operand.vmem [shape: f32[8,128], index: 5, kind: output, shape index: {}]
  %s6 = sld [smem:[#allocation0]]
  $region22: #{clip_template_forward.1} parent=0
    _
  %s8 = ssub.s32 1, %s6
  %s9 = scalar_select 0, %s8, %s6
  %s10 = sshll.u32 %s0, 4
  %s11 = int_to_ptr.vmem [resolvable:$true] %s10
  %13 = dma.vmem_to_smem %s11, 16, [#allocation3], [#allocation2]
  %s14 = sshll.u32 %s1, 4
  %s15 = int_to_ptr.vmem [resolvable:$true] %s14
  %17 = dma.vmem_to_smem %s15, 16, [#allocation4], [#allocation2]
  %18 = dma.done [#allocation2], 32
  %19 = sfence
  // Predicated region
  $region2: #{clip_template_forward.1} parent=0 // pred_check
    _
  $region3: #{clip_template_forward.1} parent=0 // pred_check_branch
    %21 = sbr.rel (0) target = $region5
  $region4: #{clip_template_forward.1} parent=0 // pred_region
    _
  $region5: #{clip_template_forward.1} parent=0 // pred_fallthru
    _
  // Predicated region
  $region6: #{clip_template_forward.1} parent=0 // pred_check
    _
  $region7: #{clip_template_forward.1} parent=0 // pred_check_branch
    %23 = sbr.rel (0) target = $region9
  $region8: #{clip_template_forward.1} parent=0 // pred_region
    _
  $region9: #{clip_template_forward.1} parent=0 // pred_fallthru
    _
  // Predicated region
  $region10: #{clip_template_forward.1} parent=0 // pred_check
    _
  $region11: #{clip_template_forward.1} parent=0 // pred_check_branch
    %25 = sbr.rel (0) target = $region13
  $region12: #{clip_template_forward.1} parent=0 // pred_region
    _
  $region13: #{clip_template_forward.1} parent=0 // pred_fallthru
    _
  %v26 = vld [vmem:[%s2] sm:$0xff]
  %v27 = vld [vmem:[%s2 + $0x8] sm:$0xff]
  %v28 = vld [vmem:[%s3] sm:$0xff]
  %v29 = vld [vmem:[%s3 + $0x8] sm:$0xff]
  %v30 = vld [vmem:[%s3 + $0x10] sm:$0xff]
  %v31 = vld [vmem:[%s3 + $0x18] sm:$0xff]
  %v32 = vld [vmem:[%s3 + $0x20] sm:$0xff]
  %v33 = vld [vmem:[%s3 + $0x28] sm:$0xff]
  %v34 = vld [vmem:[%s3 + $0x30] sm:$0xff]
  %v35 = vld [vmem:[%s3 + $0x38] sm:$0xff]
  %v36 = vld [vmem:[%s3 + $0x40] sm:$0xff]
  %v37 = vld [vmem:[%s3 + $0x48] sm:$0xff]
  %v38 = vld [vmem:[%s3 + $0x50] sm:$0xff]
  %v39 = vld [vmem:[%s3 + $0x58] sm:$0xff]
  %v40 = vld [vmem:[%s3 + $0x60] sm:$0xff]
  %v41 = vld [vmem:[%s3 + $0x68] sm:$0xff]
  %v42 = vld [vmem:[%s3 + $0x70] sm:$0xff]
  %v43 = vld [vmem:[%s3 + $0x78] sm:$0xff]
  %v44 = vld [vmem:[%s3 + $0x80] sm:$0xff]
  %v45 = vld [vmem:[%s3 + $0x88] sm:$0xff]
  %v46 = vld [vmem:[%s3 + $0x90] sm:$0xff]
  %v47 = vld [vmem:[%s3 + $0x98] sm:$0xff]
  %v48 = vld [vmem:[%s3 + $0xa0] sm:$0xff]
  %v49 = vld [vmem:[%s3 + $0xa8] sm:$0xff]
  %v50 = vld [vmem:[%s3 + $0xb0] sm:$0xff]
  %v51 = vld [vmem:[%s3 + $0xb8] sm:$0xff]
  %v52 = vld [vmem:[%s3 + $0xc0] sm:$0xff]
  %v53 = vld [vmem:[%s3 + $0xc8] sm:$0xff]
  %v54 = vld [vmem:[%s3 + $0xd0] sm:$0xff]
  %v55 = vld [vmem:[%s3 + $0xd8] sm:$0xff]
  %v56 = vld [vmem:[%s3 + $0xe0] sm:$0xff]
  %v57 = vld [vmem:[%s3 + $0xe8] sm:$0xff]
  %v58 = vld [vmem:[%s3 + $0xf0] sm:$0xff]
  %v59 = vld [vmem:[%s3 + $0xf8] sm:$0xff]
  %60 = vmatprep.subr.mxu0 0.0
  %61 = vmatpush1.msra.mxu0 %v43
  %62 = vmatprep.subr.mxu0 0.0
  %63 = vmatpush1.msra.mxu0 %v42
  %64 = vmatprep.subr.mxu0 0.0
  %65 = vmatpush1.msra.mxu0 %v41
  %66 = vmatprep.subr.mxu0 0.0
  %67 = vmatpush1.msra.mxu0 %v40
  %68 = vmatprep.subr.mxu0 0.0
  %69 = vmatpush1.msra.mxu0 %v39
  %70 = vmatprep.subr.mxu0 0.0
  %71 = vmatpush1.msra.mxu0 %v38
  %72 = vmatprep.subr.mxu0 0.0
  %73 = vmatpush1.msra.mxu0 %v37
  %74 = vmatprep.subr.mxu0 0.0
  %75 = vmatpush1.msra.mxu0 %v36
  %76 = vmatprep.subr.mxu0 0.0
  %77 = vmatpush1.msra.mxu0 %v35
  %78 = vmatprep.subr.mxu0 0.0
  %79 = vmatpush1.msra.mxu0 %v34
  %80 = vmatprep.subr.mxu0 0.0
  %81 = vmatpush1.msra.mxu0 %v33
  %82 = vmatprep.subr.mxu0 0.0
  %83 = vmatpush1.msra.mxu0 %v32
  %84 = vmatprep.subr.mxu0 0.0
  %85 = vmatpush1.msra.mxu0 %v31
  %86 = vmatprep.subr.mxu0 0.0
  %87 = vmatpush1.msra.mxu0 %v30
  %88 = vmatprep.subr.mxu0 0.0
  %89 = vmatpush1.msra.mxu0 %v29
  %90 = vmatprep.subr.mxu0 0.0
  %91 = vmatpush1.msra.mxu0 %v28
  %92 = vmatprep.subr.mxu0 0.0
  %93 = vmatpush2.msra.mxu0 %v59
  %94 = vmatprep.subr.mxu0 0.0
  %95 = vmatpush2.msra.mxu0 %v58
  %96 = vmatprep.subr.mxu0 0.0
  %97 = vmatpush2.msra.mxu0 %v57
  %98 = vmatprep.subr.mxu0 0.0
  %99 = vmatpush2.msra.mxu0 %v56
  %100 = vmatprep.subr.mxu0 0.0
  %101 = vmatpush2.msra.mxu0 %v55
  %102 = vmatprep.subr.mxu0 0.0
  %103 = vmatpush2.msra.mxu0 %v54
  %104 = vmatprep.subr.mxu0 0.0
  %105 = vmatpush2.msra.mxu0 %v53
  %106 = vmatprep.subr.mxu0 0.0
  %107 = vmatpush2.msra.mxu0 %v52
  %108 = vmatprep.subr.mxu0 0.0
  %109 = vmatpush2.msra.mxu0 %v51
  %110 = vmatprep.subr.mxu0 0.0
  %111 = vmatpush2.msra.mxu0 %v50
  %112 = vmatprep.subr.mxu0 0.0
  %113 = vmatpush2.msra.mxu0 %v49
  %114 = vmatprep.subr.mxu0 0.0
  %115 = vmatpush2.msra.mxu0 %v48
  %116 = vmatprep.subr.mxu0 0.0
  %117 = vmatpush2.msra.mxu0 %v47
  %118 = vmatprep.subr.mxu0 0.0
  %119 = vmatpush2.msra.mxu0 %v46
  %120 = vmatprep.subr.mxu0 0.0
  %121 = vmatpush2.msra.mxu0 %v45
  %122 = vmatprep.subr.mxu0 0.0
  %123 = vmatpush2.msra.mxu0 %v44
  %124 = vmatprep.mubr.f32.mxu0 %v27
  %125 = vmatmul.mubr.f32.gmra.mxu0 %v26
  %v126 = vpop.f32.mrf.mxu0
  %v127 = vadd.f32 0.0, %v126
  %v128 = vpop.f32.mrf.mxu0
  %129 = vdwg.mxu0
  %v130 = vlaneseq
  %v131 = vshrl.u32 %v130, 7
  %v132 = vlaneseq
  %v133 = vand.u32 %v132, 127
  %s134 = sld [smem:[#allocation3]]
  %vm135 = vcmp.eq.s32.totalorder %v131, 0
  %v136 = vstv %s134
  %vm137 = vcmp.eq.s32.totalorder %v133, %v136
  %vm138 = vmand %vm135, %vm137
  %v139 = vsel %vm138, 0.125, 0.0
  %v140 = vadd.f32 %v139, 0.0
  %s141 = sld [smem:[#allocation3 + $0x1]]
  %v142 = vstv %s141
  %vm143 = vcmp.eq.s32.totalorder %v133, %v142
  %vm144 = vmand %vm135, %vm143
  %v145 = vsel %vm144, 0.125, 0.0
  %v146 = vadd.f32 %v140, %v145
  %s147 = sld [smem:[#allocation3 + $0x2]]
  %v148 = vstv %s147
  %vm149 = vcmp.eq.s32.totalorder %v133, %v148
  %vm150 = vmand %vm135, %vm149
  %v151 = vsel %vm150, 0.125, 0.0
  %v152 = vadd.f32 %v146, %v151
  %s153 = sld [smem:[#allocation3 + $0x3]]
  %v154 = vstv %s153
  %vm155 = vcmp.eq.s32.totalorder %v133, %v154
  %vm156 = vmand %vm135, %vm155
  %v157 = vsel %vm156, 0.125, 0.0
  %v158 = vadd.f32 %v152, %v157
  %s159 = sld [smem:[#allocation3 + $0x4]]
  %v160 = vstv %s159
  %vm161 = vcmp.eq.s32.totalorder %v133, %v160
  %vm162 = vmand %vm135, %vm161
  %v163 = vsel %vm162, 0.125, 0.0
  %v164 = vadd.f32 %v158, %v163
  %s165 = sld [smem:[#allocation3 + $0x5]]
  %v166 = vstv %s165
  %vm167 = vcmp.eq.s32.totalorder %v133, %v166
  %vm168 = vmand %vm135, %vm167
  %v169 = vsel %vm168, 0.125, 0.0
  %v170 = vadd.f32 %v164, %v169
  %s171 = sld [smem:[#allocation3 + $0x6]]
  %v172 = vstv %s171
  %vm173 = vcmp.eq.s32.totalorder %v133, %v172
  %vm174 = vmand %vm135, %vm173
  %v175 = vsel %vm174, 0.125, 0.0
  %v176 = vadd.f32 %v170, %v175
  %s177 = sld [smem:[#allocation3 + $0x7]]
  %v178 = vstv %s177
  %vm179 = vcmp.eq.s32.totalorder %v133, %v178
  %vm180 = vmand %vm135, %vm179
  %v181 = vsel %vm180, 0.125, 0.0
  %v182 = vadd.f32 %v176, %v181
  %s183 = sld [smem:[#allocation3 + $0x8]]
  %vm184 = vcmp.eq.s32.totalorder %v131, 1
  %v185 = vstv %s183
  %vm186 = vcmp.eq.s32.totalorder %v133, %v185
  %vm187 = vmand %vm184, %vm186
  %v188 = vsel %vm187, 0.125, 0.0
  %v189 = vadd.f32 %v182, %v188
  %s190 = sld [smem:[#allocation3 + $0x9]]
  %v191 = vstv %s190
  %vm192 = vcmp.eq.s32.totalorder %v133, %v191
  %vm193 = vmand %vm184, %vm192
  %v194 = vsel %vm193, 0.125, 0.0
  %v195 = vadd.f32 %v189, %v194
  %s196 = sld [smem:[#allocation3 + $0xa]]
  %v197 = vstv %s196
  %vm198 = vcmp.eq.s32.totalorder %v133, %v197
  %vm199 = vmand %vm184, %vm198
  %v200 = vsel %vm199, 0.125, 0.0
  %v201 = vadd.f32 %v195, %v200
  %s202 = sld [smem:[#allocation3 + $0xb]]
  %v203 = vstv %s202
  %vm204 = vcmp.eq.s32.totalorder %v133, %v203
  %vm205 = vmand %vm184, %vm204
  %v206 = vsel %vm205, 0.125, 0.0
  %v207 = vadd.f32 %v201, %v206
  %s208 = sld [smem:[#allocation3 + $0xc]]
  %v209 = vstv %s208
  %vm210 = vcmp.eq.s32.totalorder %v133, %v209
  %vm211 = vmand %vm184, %vm210
  %v212 = vsel %vm211, 0.125, 0.0
  %v213 = vadd.f32 %v207, %v212
  %s214 = sld [smem:[#allocation3 + $0xd]]
  %v215 = vstv %s214
  %vm216 = vcmp.eq.s32.totalorder %v133, %v215
  %vm217 = vmand %vm184, %vm216
  %v218 = vsel %vm217, 0.125, 0.0
  %v219 = vadd.f32 %v213, %v218
  %s220 = sld [smem:[#allocation3 + $0xe]]
  %v221 = vstv %s220
  %vm222 = vcmp.eq.s32.totalorder %v133, %v221
  %vm223 = vmand %vm184, %vm222
  %v224 = vsel %vm223, 0.125, 0.0
  %v225 = vadd.f32 %v219, %v224
  %s226 = sld [smem:[#allocation3 + $0xf]]
  %v227 = vstv %s226
  %vm228 = vcmp.eq.s32.totalorder %v133, %v227
  %vm229 = vmand %vm184, %vm228
  %v230 = vsel %vm229, 0.125, 0.0
  %v231 = vadd.f32 %v225, %v230
  %v232 = vld [vmem:[%s4] sm:$0xff]
  %v233 = vld [vmem:[%s4 + $0x8] sm:$0xff]
  %v234 = vld [vmem:[%s4 + $0x10] sm:$0xff]
  %v235 = vld [vmem:[%s4 + $0x18] sm:$0xff]
  %vm236 = vcmask 261120
  %v238 = vsel %vm236, %v231, 0
  %240 = vmatprep.subr.mxu0 0.0
  %241 = vmatpush1.msra.mxu0 0.0
  %242 = vmatprep.subr.mxu0 0.0
  %243 = vmatpush1.msra.mxu0 0.0
  %244 = vmatprep.subr.mxu0 0.0
  %245 = vmatpush1.msra.mxu0 0.0
  %246 = vmatprep.subr.mxu0 0.0
  %247 = vmatpush1.msra.mxu0 0.0
  %248 = vmatprep.subr.mxu0 0.0
  %249 = vmatpush1.msra.mxu0 0.0
  %250 = vmatprep.subr.mxu0 0.0
  %251 = vmatpush1.msra.mxu0 0.0
  %252 = vmatprep.subr.mxu0 0.0
  %253 = vmatpush1.msra.mxu0 0.0
  %254 = vmatprep.subr.mxu0 0.0
  %255 = vmatpush1.msra.mxu0 0.0
  %256 = vmatprep.subr.mxu0 0.0
  %257 = vmatpush1.msra.mxu0 0.0
  %258 = vmatprep.subr.mxu0 0.0
  %259 = vmatpush1.msra.mxu0 0.0
  %260 = vmatprep.subr.mxu0 0.0
  %261 = vmatpush1.msra.mxu0 0.0
  %262 = vmatprep.subr.mxu0 0.0
  %263 = vmatpush1.msra.mxu0 0.0
  %264 = vmatprep.subr.mxu0 0.0
  %265 = vmatpush1.msra.mxu0 %v235
  %266 = vmatprep.subr.mxu0 0.0
  %267 = vmatpush1.msra.mxu0 %v234
  %268 = vmatprep.subr.mxu0 0.0
  %269 = vmatpush1.msra.mxu0 %v233
  %270 = vmatprep.subr.mxu0 0.0
  %271 = vmatpush1.msra.mxu0 %v232
  %272 = vmatprep.subr.mxu0 0.0
  %273 = vmatpush2.msra.mxu0 0.0
  %274 = vmatprep.subr.mxu0 0.0
  %275 = vmatpush2.msra.mxu0 0.0
  %276 = vmatprep.subr.mxu0 0.0
  %277 = vmatpush2.msra.mxu0 0.0
  %278 = vmatprep.subr.mxu0 0.0
  %279 = vmatpush2.msra.mxu0 0.0
  %280 = vmatprep.subr.mxu0 0.0
  %281 = vmatpush2.msra.mxu0 0.0
  %282 = vmatprep.subr.mxu0 0.0
  %283 = vmatpush2.msra.mxu0 0.0
  %284 = vmatprep.subr.mxu0 0.0
  %285 = vmatpush2.msra.mxu0 0.0
  %286 = vmatprep.subr.mxu0 0.0
  %287 = vmatpush2.msra.mxu0 0.0
  %288 = vmatprep.subr.mxu0 0.0
  %289 = vmatpush2.msra.mxu0 0.0
  %290 = vmatprep.subr.mxu0 0.0
  %291 = vmatpush2.msra.mxu0 0.0
  %292 = vmatprep.subr.mxu0 0.0
  %293 = vmatpush2.msra.mxu0 0.0
  %294 = vmatprep.subr.mxu0 0.0
  %295 = vmatpush2.msra.mxu0 0.0
  %296 = vmatprep.subr.mxu0 0.0
  %297 = vmatpush2.msra.mxu0 0.0
  %298 = vmatprep.subr.mxu0 0.0
  %299 = vmatpush2.msra.mxu0 0.0
  %300 = vmatprep.subr.mxu0 0.0
  %301 = vmatpush2.msra.mxu0 0.0
  %302 = vmatprep.subr.mxu0 0.0
  %303 = vmatpush2.msra.mxu0 0.0
  %304 = vmatprep.mubr.f32.mxu0 0.0
  %305 = vmatmul.mubr.f32.gmra.mxu0 %v238
  %v306 = vpop.f32.mrf.mxu0
  %v307 = vadd.f32 0.0, %v306
  %v308 = vpop.f32.mrf.mxu0
  %309 = vdwg.mxu0
  %v310 = vmul.f32 %v127, %v127
  %v311 = vsel %vm236, %v310, 0.0
  %312 = vadd.xlane.f32.xlu0 %v311
  %v313 = vpop.xlane.xlu0 %312
  %v314 = vadd.f32 %v313, 1e-12
  %v315 = vrsqrt.pop %v314
  %v316 = vmul.f32 %v127, %v315
  %v317 = vmul.f32 %v307, %v307
  %vm318 = vcmask 254976
  %v319 = vsel %vm318, %v317, 0.0
  %320 = vadd.xlane.f32.xlu0 %v319
  %v321 = vpop.xlane.xlu0 %320
  %v322 = vadd.f32 %v321, 1e-12
  %v323 = vrsqrt.pop %v322
  %v324 = vmul.f32 %v307, %v323
  %v326 = vsel %vm236, %v324, 0
  %v329 = vsel %vm236, %v316, 0
  %331 = vmatprep.subr.mxu0 0.0
  %332 = vmatpush1.xpose.msra.mxu0 0.0
  %333 = vmatprep.subr.mxu0 0.0
  %334 = vmatpush1.xpose.msra.mxu0 0.0
  %335 = vmatprep.subr.mxu0 0.0
  %336 = vmatpush1.xpose.msra.mxu0 0.0
  %337 = vmatprep.subr.mxu0 0.0
  %338 = vmatpush1.xpose.msra.mxu0 0.0
  %339 = vmatprep.subr.mxu0 0.0
  %340 = vmatpush1.xpose.msra.mxu0 0.0
  %341 = vmatprep.subr.mxu0 0.0
  %342 = vmatpush1.xpose.msra.mxu0 0.0
  %343 = vmatprep.subr.mxu0 0.0
  %344 = vmatpush1.xpose.msra.mxu0 0.0
  %345 = vmatprep.subr.mxu0 0.0
  %346 = vmatpush1.xpose.msra.mxu0 0.0
  %347 = vmatprep.subr.mxu0 0.0
  %348 = vmatpush1.xpose.msra.mxu0 0.0
  %349 = vmatprep.subr.mxu0 0.0
  %350 = vmatpush1.xpose.msra.mxu0 0.0
  %351 = vmatprep.subr.mxu0 0.0
  %352 = vmatpush1.xpose.msra.mxu0 0.0
  %353 = vmatprep.subr.mxu0 0.0
  %354 = vmatpush1.xpose.msra.mxu0 0.0
  %355 = vmatprep.subr.mxu0 0.0
  %356 = vmatpush1.xpose.msra.mxu0 0.0
  %357 = vmatprep.subr.mxu0 0.0
  %358 = vmatpush1.xpose.msra.mxu0 0.0
  %359 = vmatprep.subr.mxu0 0.0
  %360 = vmatpush1.xpose.msra.mxu0 0.0
  %361 = vmatprep.subr.mxu0 0.0
  %362 = vmatpush1.xpose.msra.mxu0 %v329
  %363 = vmatprep.subr.mxu0 0.0
  %364 = vmatpush2.xpose.msra.mxu0 0.0
  %365 = vmatprep.subr.mxu0 0.0
  %366 = vmatpush2.xpose.msra.mxu0 0.0
  %367 = vmatprep.subr.mxu0 0.0
  %368 = vmatpush2.xpose.msra.mxu0 0.0
  %369 = vmatprep.subr.mxu0 0.0
  %370 = vmatpush2.xpose.msra.mxu0 0.0
  %371 = vmatprep.subr.mxu0 0.0
  %372 = vmatpush2.xpose.msra.mxu0 0.0
  %373 = vmatprep.subr.mxu0 0.0
  %374 = vmatpush2.xpose.msra.mxu0 0.0
  %375 = vmatprep.subr.mxu0 0.0
  %376 = vmatpush2.xpose.msra.mxu0 0.0
  %377 = vmatprep.subr.mxu0 0.0
  %378 = vmatpush2.xpose.msra.mxu0 0.0
  %379 = vmatprep.subr.mxu0 0.0
  %380 = vmatpush2.xpose.msra.mxu0 0.0
  %381 = vmatprep.subr.mxu0 0.0
  %382 = vmatpush2.xpose.msra.mxu0 0.0
  %383 = vmatprep.subr.mxu0 0.0
  %384 = vmatpush2.xpose.msra.mxu0 0.0
  %385 = vmatprep.subr.mxu0 0.0
  %386 = vmatpush2.xpose.msra.mxu0 0.0
  %387 = vmatprep.subr.mxu0 0.0
  %388 = vmatpush2.xpose.msra.mxu0 0.0
  %389 = vmatprep.subr.mxu0 0.0
  %390 = vmatpush2.xpose.msra.mxu0 0.0
  %391 = vmatprep.subr.mxu0 0.0
  %392 = vmatpush2.xpose.msra.mxu0 0.0
  %393 = vmatprep.subr.mxu0 0.0
  %394 = vmatpush2.xpose.msra.mxu0 0.0
  %395 = vmatprep.mubr.f32.mxu0 0.0
  %396 = vmatmul.mubr.f32.gmra.mxu0 %v326
  %v397 = vpop.f32.mrf.mxu0
  %v398 = vadd.f32 0.0, %v397
  %v399 = vpop.f32.mrf.mxu0
  %400 = vdwg.mxu0
  %v401 = vmul.f32 %v398, 14.285714
  %vm402 = vcmp.lt.s32.totalorder %v133, 4
  %v403 = vsel %vm402, %v401, -1e+30
  %vm404 = vcmask 58368
  %v405 = vsel %vm404, %v403, -inf
  %406 = vmax.xlane.f32.xlu0 %v405
  %v407 = vpop.xlane.xlu0 %406
  %v408 = vsub.f32 %v403, %v407
  %v409 = vmul.f32 %v408, 1.442695
  %v410 = vpow.pop %v409
  %v411 = vsel %vm404, %v410, 0.0
  %412 = vadd.xlane.f32.xlu0 %v411
  %v413 = vpop.xlane.xlu0 %412
  %v414 = vlog2.pop %v413
  %v415 = vmul.f32 %v414, 0.6931472
  %v416 = vadd.f32 %v407, %v415
  %s417 = sld [smem:[#allocation4]]
  %v418 = vstv %s417
  %vm419 = vcmp.eq.s32.totalorder %v133, %v418
  %vm420 = vmand %vm135, %vm419
  %v421 = vsel %vm420, 1.0, 0.0
  %v422 = vadd.f32 %v421, 0.0
  %s423 = sld [smem:[#allocation4 + $0x1]]
  %v424 = vstv %s423
  %vm425 = vcmp.eq.s32.totalorder %v133, %v424
  %vm426 = vmand %vm184, %vm425
  %v427 = vsel %vm426, 1.0, 0.0
  %v428 = vadd.f32 %v422, %v427
  %v429 = vmul.f32 %v401, %v428
  %v430 = vsel %vm404, %v429, 0.0
  %431 = vadd.xlane.f32.xlu0 %v430
  %v432 = vpop.xlane.xlu0 %431
  %v433 = vsub.f32 %v416, %v432
  %vm434 = vcmask 1024
  %v435 = vsel %vm434, %v433, 0.0
  %436 = vadd.xlane.f32.xlu0 %v435
  %v437 = vpop.xlane.xlu0 %436
  %v438 = vrot.slane %v437, 4
  %v439 = vadd.f32 %v437, %v438
  %v440 = vrot.slane %v439, 2
  %v441 = vadd.f32 %v439, %v440
  %v442 = vrot.slane %v441, 1
  %v443 = vadd.f32 %v441, %v442
  %s444 = vtos %v443
  %v445 = vrcp.pop 2.0
  %s446 = vtos %v445
  %s447 = smul.f32 %s444, %s446
  %448 = vst [vmem:[%s5] sm:$0xff] 0.0
  %449 = vst.msk [vmem:[%s5] sm:$0x3] %vm404, %v401
  %v450 = vstv %s447
  %451 = vst [vmem:[%s5 + $0x2] sm:$0x1] %v450
  // Predicated region
  $region14: #{clip_template_forward.1} parent=0 // pred_check
    _
  $region15: #{clip_template_forward.1} parent=0 // pred_check_branch
    %453 = sbr.rel (0) target = $region17
  $region16: #{clip_template_forward.1} parent=0 // pred_region
    _
  $region17: #{clip_template_forward.1} parent=0 // pred_fallthru
    _
  // Predicated region
  $region18: #{clip_template_forward.1} parent=0 // pred_check
    _
  $region19: #{clip_template_forward.1} parent=0 // pred_check_branch
    %455 = sbr.rel (0) target = $region21
  $region20: #{clip_template_forward.1} parent=0 // pred_region
    _
  $region21: #{clip_template_forward.1} parent=0 // pred_fallthru
    _

</llo_original>
